<compile_context>
chip_gen: v6e
topology: v6e:2x2x1
jax: 0.10.0
libtpu: 0.0.40
codegen_flags: <defaults>
</compile_context>

<pallas_src>
import math

import jax
import jax.numpy as jnp
from jax.experimental import pallas as pl
from jax.experimental.pallas import tpu as pltpu


def _round_up(x, m):
    return (x + m - 1) // m * m


# --------------------------------------------------------------------------
# Kernel 1: fused q/k/v/pos projections  (x @ W + b), lane-dense output.
# --------------------------------------------------------------------------
def _proj_kernel(x_ref, w_ref, b_ref, o_ref):
    acc = jnp.dot(x_ref[0], w_ref[0], preferred_element_type=jnp.float32)
    o_ref[0] = (acc + b_ref[0]).astype(o_ref.dtype)


def fused_projections(query, key, value, pos, wq, wk, wv, wpos, bq, bk, bv):
    B, T, D = query.shape
    M = B * T
    x = jnp.stack([query.reshape(M, D), key.reshape(M, D),
                   value.reshape(M, D), pos.reshape(M, D)], axis=0)   # (4, M, D)
    w = jnp.stack([wq, wk, wv, wpos], axis=0)                         # (4, D, D)
    b = jnp.stack([bq, bk, bv, jnp.zeros_like(bq)],                   # pos_proj: no bias
                  axis=0)[:, None, :]                                 # (4, 1, D)

    tm = min(_round_up(M, 8), 512)
    m_pad = _round_up(M, tm)
    if m_pad != M:
        x = jnp.pad(x, ((0, 0), (0, m_pad - M), (0, 0)))

    out = pl.pallas_call(
        _proj_kernel,
        out_shape=jax.ShapeDtypeStruct((4, m_pad, D), jnp.float32),
        grid_spec=pltpu.PrefetchScalarGridSpec(
            num_scalar_prefetch=0,
            grid=(4, m_pad // tm),
            in_specs=[
                pl.BlockSpec((1, tm, D), lambda s, i: (s, i, 0)),   # activations
                pl.BlockSpec((1, D, D), lambda s, i: (s, 0, 0)),    # weight (stays resident)
                pl.BlockSpec((1, 1, D), lambda s, i: (s, 0, 0)),    # bias row
            ],
            out_specs=pl.BlockSpec((1, tm, D), lambda s, i: (s, i, 0)),
        ),
        compiler_params=pltpu.CompilerParams(
            dimension_semantics=("parallel", "parallel")),
    )(x, w, b)

    out = out[:, :M].reshape(4, B, T, D)
    return out[0], out[1], out[2], out[3]


# --------------------------------------------------------------------------
# Kernel 2: per-batch pos scores  (q + v_bias) @ pos^T for every head.
# --------------------------------------------------------------------------
def _make_pos_score_kernel(num_heads, d_head):
    def kernel(q_ref, vb_ref, p_ref, o_ref):
        q = q_ref[0]            # (T, D)
        p = p_ref[0]            # (T, D)
        vb = vb_ref[...]        # (1, D) flattened (H, dh)
        for h in range(num_heads):
            sl = slice(h * d_head, (h + 1) * d_head)
            qv = q[:, sl] + vb[:, sl]
            o_ref[0, h] = jax.lax.dot_general(
                qv, p[:, sl], (((1,), (1,)), ((), ())),
                preferred_element_type=jnp.float32)
    return kernel


def pos_scores(q_p, pos_p, v_bias):
    B, T, D = q_p.shape
    H, dh = v_bias.shape
    vb = v_bias.reshape(1, D)
    return pl.pallas_call(
        _make_pos_score_kernel(H, dh),
        out_shape=jax.ShapeDtypeStruct((B, H, T, T), jnp.float32),
        grid_spec=pltpu.PrefetchScalarGridSpec(
            num_scalar_prefetch=0,
            grid=(B,),
            in_specs=[
                pl.BlockSpec((1, T, D), lambda b: (b, 0, 0)),
                pl.BlockSpec((1, D), lambda b: (0, 0)),
                pl.BlockSpec((1, T, D), lambda b: (b, 0, 0)),
            ],
            out_specs=pl.BlockSpec((1, H, T, T), lambda b: (b, 0, 0, 0)),
        ),
        compiler_params=pltpu.CompilerParams(
            dimension_semantics=("parallel",)),
    )(q_p, vb, pos_p)


# --------------------------------------------------------------------------
# Relative shift (exact reference pad / reshape / slice) — pure layout, in JAX.
# --------------------------------------------------------------------------
def relative_shift(pos_score):
    B, H, T1, T2 = pos_score.shape
    zeros = jnp.zeros((B, H, T1, 1), pos_score.dtype)
    padded = jnp.concatenate([zeros, pos_score], axis=-1)
    padded = padded.reshape(B, H, T2 + 1, T1)
    return padded[:, :, 1:].reshape(B, H, T1, T2)


# --------------------------------------------------------------------------
# Kernel 3: fused content-score + combine + mask + softmax + attn@V + out_proj.
# --------------------------------------------------------------------------
def _make_attn_kernel(num_heads, d_head, inv_sqrt_dim):
    def kernel(q_ref, k_ref, v_ref, u_ref, pos_ref, mask_ref, wo_ref, bo_ref,
               o_ref):
        q = q_ref[0]            # (T, D)
        k = k_ref[0]            # (T, D)
        v = v_ref[0]            # (T, D)
        u = u_ref[...]          # (1, D) flattened (H, dh)
        msk = mask_ref[0]       # (T, T) float, 1.0 == masked
        wo = wo_ref[...]        # (D, D)
        neg = jnp.float32(-1e9)

        acc = jnp.zeros(q.shape, jnp.float32)   # (T, D) — running out_proj accum
        for h in range(num_heads):
            sl = slice(h * d_head, (h + 1) * d_head)
            qu = q[:, sl] + u[:, sl]
            content = jax.lax.dot_general(
                qu, k[:, sl], (((1,), (1,)), ((), ())),
                preferred_element_type=jnp.float32)
            score = (content + pos_ref[0, h]) * inv_sqrt_dim
            score = jnp.where(msk > 0.0, neg, score)
            smax = jnp.max(score, axis=-1, keepdims=True)
            e = jnp.exp(score - smax)
            attn = e / jnp.sum(e, axis=-1, keepdims=True)
            # TODO(synk): attention dropout (p=0.1) omitted — eval-mode identity.
            ctx_h = jnp.dot(attn, v[:, sl], preferred_element_type=jnp.float32)
            # out_proj folded in: context @ Wo == sum_h ctx_h @ Wo[h*dh:(h+1)*dh]
            acc = acc + jnp.dot(ctx_h, wo[sl, :],
                                preferred_element_type=jnp.float32)
        o_ref[0] = (acc + bo_ref[...]).astype(o_ref.dtype)
    return kernel


def relative_mha(query, key, value, pos_embedding, mask, params):
    """Forward pass of RelativeMultiHeadAttention (eval mode)."""
    B, T, D = query.shape
    H, dh = params["u_bias"].shape
    assert H * dh == D

    q_p, k_p, v_p, pos_p = fused_projections(
        query, key, value, pos_embedding,
        params["wq"], params["wk"], params["wv"], params["wpos"],
        params["bq"], params["bk"], params["bv"])

    pos_sc = pos_scores(q_p, pos_p, params["v_bias"])
    pos_sc = relative_shift(pos_sc)

    if mask is None:
        mask_f = jnp.zeros((B, T, T), jnp.float32)
    else:
        mask_f = jnp.broadcast_to(mask, (B, T, T)).astype(jnp.float32)

    u_flat = params["u_bias"].reshape(1, D)
    bo = params["bo"].reshape(1, D)

    out = pl.pallas_call(
        _make_attn_kernel(H, dh, 1.0 / math.sqrt(D)),
        out_shape=jax.ShapeDtypeStruct((B, T, D), jnp.float32),
        grid_spec=pltpu.PrefetchScalarGridSpec(
            num_scalar_prefetch=0,
            grid=(B,),
            in_specs=[
                pl.BlockSpec((1, T, D), lambda b: (b, 0, 0)),       # q proj
                pl.BlockSpec((1, T, D), lambda b: (b, 0, 0)),       # k proj
                pl.BlockSpec((1, T, D), lambda b: (b, 0, 0)),       # v proj
                pl.BlockSpec((1, D), lambda b: (0, 0)),             # u_bias
                pl.BlockSpec((1, H, T, T), lambda b: (b, 0, 0, 0)),  # shifted pos score
                pl.BlockSpec((1, T, T), lambda b: (b, 0, 0)),       # mask
                pl.BlockSpec((D, D), lambda b: (0, 0)),             # W_out
                pl.BlockSpec((1, D), lambda b: (0, 0)),             # b_out
            ],
            out_specs=pl.BlockSpec((1, T, D), lambda b: (b, 0, 0)),
        ),
        compiler_params=pltpu.CompilerParams(
            dimension_semantics=("parallel",)),
    )(q_p, k_p, v_p, u_flat, pos_sc, mask_f, params["wo"], bo)
    return out


# --------------------------------------------------------------------------
# Pure-JAX reference (mirrors the PyTorch forward) for self-checking.
# --------------------------------------------------------------------------
def relative_mha_ref(query, key, value, pos_embedding, mask, params):
    B, T, D = query.shape
    H, dh = params["u_bias"].shape
    q = query.reshape(B * T, D) @ params["wq"] + params["bq"]
    k = key.reshape(B * T, D) @ params["wk"] + params["bk"]
    v = value.reshape(B * T, D) @ params["wv"] + params["bv"]
    p = pos_embedding.reshape(B * T, D) @ params["wpos"]
    q = q.reshape(B, T, H, dh)
    k = k.reshape(B, T, H, dh).transpose(0, 2, 1, 3)
    v = v.reshape(B, T, H, dh).transpose(0, 2, 1, 3)
    p = p.reshape(B, T, H, dh)

    content = jnp.einsum("bihd,bhjd->bhij", q + params["u_bias"], k)
    pos_sc = jnp.einsum("bihd,bjhd->bhij", q + params["v_bias"], p)
    pos_sc = relative_shift(pos_sc)
    score = (content + pos_sc) / math.sqrt(D)
    if mask is not None:
        mb = jnp.broadcast_to(mask, (B, T, T))[:, None, :, :]
        score = jnp.where(mb, -1e9, score)
    attn = jax.nn.softmax(score, axis=-1)
    ctx = jnp.einsum("bhij,bhjd->bhid", attn, v)
    ctx = ctx.transpose(0, 2, 1, 3).reshape(B, T, D)
    return ctx @ params["wo"] + params["bo"]


if __name__ == "__main__":
    d_model, num_heads = 128, 4
    d_head = d_model // num_heads
    B, T = 2, 8

    rng = jax.random.PRNGKey(0)
    ks = jax.random.split(rng, 16)
    s = 1.0 / math.sqrt(d_model)
    params = {
        "wq": s * jax.random.normal(ks[0], (d_model, d_model), jnp.float32),
        "bq": 0.1 * jax.random.normal(ks[1], (d_model,), jnp.float32),
        "wk": s * jax.random.normal(ks[2], (d_model, d_model), jnp.float32),
        "bk": 0.1 * jax.random.normal(ks[3], (d_model,), jnp.float32),
        "wv": s * jax.random.normal(ks[4], (d_model, d_model), jnp.float32),
        "bv": 0.1 * jax.random.normal(ks[5], (d_model,), jnp.float32),
        "wpos": s * jax.random.normal(ks[6], (d_model, d_model), jnp.float32),
        "wo": s * jax.random.normal(ks[7], (d_model, d_model), jnp.float32),
        "bo": 0.1 * jax.random.normal(ks[8], (d_model,), jnp.float32),
        "u_bias": s * jax.random.normal(ks[9], (num_heads, d_head), jnp.float32),
        "v_bias": s * jax.random.normal(ks[10], (num_heads, d_head), jnp.float32),
    }

    query = jax.random.normal(ks[11], (B, T, d_model), jnp.float32)
    key_in = jax.random.normal(ks[12], (B, T, d_model), jnp.float32)
    value = jax.random.normal(ks[13], (B, T, d_model), jnp.float32)
    pos_emb = jax.random.normal(ks[14], (B, T, d_model), jnp.float32)

    lengths = jnp.array([T, T - 2], dtype=jnp.int32)
    key_mask = jnp.arange(T)[None, :] >= lengths[:, None]   # (B, T) True = masked
    mask = key_mask[:, None, :]                              # (B, 1, T)

    out = relative_mha(query, key_in, value, pos_emb, mask, params)
    out = jax.block_until_ready(out)
    assert out.shape == (B, T, d_model), out.shape

    ref = relative_mha_ref(query, key_in, value, pos_emb, mask, params)
    max_err = float(jnp.max(jnp.abs(out - ref)))
    assert jnp.allclose(out, ref, atol=2e-2, rtol=2e-2), max_err

    print("KERNEL_OK")
</pallas_src>

<mosaic_0001>
module attributes {stable_mosaic.version = 11 : i64} {
  func.func @_proj_kernel(%arg0: i32, %arg1: i32, %arg2: memref<1x16x128xf32, #tpu.memory_space<vmem>>, %arg3: memref<1x128x128xf32, #tpu.memory_space<vmem>>, %arg4: memref<1x1x128xf32, #tpu.memory_space<vmem>>, %arg5: memref<1x16x128xf32, #tpu.memory_space<vmem>>) attributes {dimension_semantics = [#tpu.dimension_semantics<parallel>, #tpu.dimension_semantics<parallel>], iteration_bounds = array<i64: 4, 1>, scalar_prefetch = 0 : i64, scratch_operands = 0 : i64, tpu.core_type = #tpu.core_type<tc>, window_params = [{transform_indices = @transform_0, window_bounds = array<i64: 1, 16, 128>}, {transform_indices = @transform_1, window_bounds = array<i64: 1, 128, 128>}, {transform_indices = @transform_2, window_bounds = array<i64: 1, 1, 128>}, {transform_indices = @transform_3, window_bounds = array<i64: 1, 16, 128>}]} {
    %c0 = arith.constant 0 : index
    %c0_0 = arith.constant 0 : index
    %c0_1 = arith.constant 0 : index
    %0 = vector.load %arg2[%c0, %c0_0, %c0_1] : memref<1x16x128xf32, #tpu.memory_space<vmem>>, vector<1x16x128xf32>
    %1 = vector.shape_cast %0 : vector<1x16x128xf32> to vector<16x128xf32>
    %c0_2 = arith.constant 0 : index
    %c0_3 = arith.constant 0 : index
    %c0_4 = arith.constant 0 : index
    %2 = vector.load %arg3[%c0_2, %c0_3, %c0_4] : memref<1x128x128xf32, #tpu.memory_space<vmem>>, vector<1x128x128xf32>
    %3 = vector.shape_cast %2 : vector<1x128x128xf32> to vector<128x128xf32>
    %cst = arith.constant dense<0.000000e+00> : vector<16x128xf32>
    %4 = tpu.matmul %1, %3, %cst {dimension_numbers = #tpu.dot_dimension_numbers<[1], [0], [0], [1], [0, 0, 1, 1], [], []>} : vector<16x128xf32>, vector<128x128xf32>, vector<16x128xf32> -> vector<16x128xf32>
    %c0_5 = arith.constant 0 : index
    %c0_6 = arith.constant 0 : index
    %c0_7 = arith.constant 0 : index
    %5 = vector.load %arg4[%c0_5, %c0_6, %c0_7] : memref<1x1x128xf32, #tpu.memory_space<vmem>>, vector<1x1x128xf32>
    %6 = vector.shape_cast %5 : vector<1x1x128xf32> to vector<1x128xf32>
    %7 = vector.broadcast %6 : vector<1x128xf32> to vector<16x128xf32>
    %8 = arith.addf %4, %7 : vector<16x128xf32>
    %c0_8 = arith.constant 0 : index
    %c0_9 = arith.constant 0 : index
    %c0_10 = arith.constant 0 : index
    %9 = vector.load %arg5[%c0_8, %c0_9, %c0_10] : memref<1x16x128xf32, #tpu.memory_space<vmem>>, vector<1x16x128xf32>
    %10 = vector.shape_cast %9 : vector<1x16x128xf32> to vector<16x128xf32>
    %11 = vector.shape_cast %8 : vector<16x128xf32> to vector<1x16x128xf32>
    tpu.vector_store %arg5[%c0_8, %c0_9, %c0_10], %11 {strides = array<i32>} : memref<1x16x128xf32, #tpu.memory_space<vmem>>, vector<1x16x128xf32>,
    return
  }
  func.func @transform_0(%arg0: i32, %arg1: i32) -> (i32, i32, i32) {
    %c0_i32 = arith.constant 0 : i32
    %c0_i32_0 = arith.constant 0 : i32
    return %arg0, %arg1, %c0_i32 : i32, i32, i32
  }
  func.func @transform_1(%arg0: i32, %arg1: i32) -> (i32, i32, i32) {
    %c0_i32 = arith.constant 0 : i32
    %c0_i32_0 = arith.constant 0 : i32
    %c0_i32_1 = arith.constant 0 : i32
    return %arg0, %c0_i32, %c0_i32_0 : i32, i32, i32
  }
  func.func @transform_2(%arg0: i32, %arg1: i32) -> (i32, i32, i32) {
    %c0_i32 = arith.constant 0 : i32
    %c0_i32_0 = arith.constant 0 : i32
    %c0_i32_1 = arith.constant 0 : i32
    return %arg0, %c0_i32, %c0_i32_0 : i32, i32, i32
  }
  func.func @transform_3(%arg0: i32, %arg1: i32) -> (i32, i32, i32) {
    %c0_i32 = arith.constant 0 : i32
    %c0_i32_0 = arith.constant 0 : i32
    return %arg0, %arg1, %c0_i32 : i32, i32, i32
  }
}

</mosaic_0001>

<llo_original>
// kernel: tpu_custom_call.1
$region0: #{tpu_custom_call.1}
  #allocation0 [shape = 'u32[]', space=smem, size = 0x4, offset = 0x4, fixed_abs, tag = 'smem constant byte address 0x4 - core index']
  #allocation1 [shape = 'u32[144,128]{1,0:T(1,128)}', space=vmem, size = 0x12000, scoped, tag = 'internal scratch']
  %s0 = inlined_call_operand.hbm [shape: f32[4,16,128], index: 0, kind: input, shape index: {}]
  %s1 = inlined_call_operand.hbm [shape: f32[4,128,128], index: 1, kind: input, shape index: {}]
  %s2 = inlined_call_operand.hbm [shape: f32[4,1,128], index: 2, kind: input, shape index: {}]
  %s3 = inlined_call_operand.hbm [shape: f32[4,16,128], index: 3, kind: output, shape index: {}]
  %s4 = sld [smem:[#allocation0]]
  $region57: #{tpu_custom_call.1} parent=0
    _
  %s6 = ssub.s32 1, %s4
  %s7 = scalar_select 0, %s6, %s4
  $region1: #{tpu_custom_call.1} parent=0
    #allocation2 [shape = 'u8[16384]{0}', space=vmem, size = 0x4000, scoped, tag = 'input window, operand 0']
    #allocation3 [shape = 's32[2]{0}', space=sflag, size = 0x8, scoped, tag = 'scoped memory for tpu_custom_call.1']
    #allocation4 [shape = 's32[2]{0}', space=sflag, size = 0x8, scoped, tag = 'scoped memory for tpu_custom_call.1']
    #allocation5 [shape = 'u8[131072]{0}', space=vmem, size = 0x20000, scoped, tag = 'input window, operand 1']
    #allocation6 [shape = 's32[2]{0}', space=sflag, size = 0x8, scoped, tag = 'scoped memory for tpu_custom_call.1']
    #allocation7 [shape = 'u8[1024]{0}', space=vmem, size = 0x400, scoped, tag = 'input window, operand 2']
    #allocation8 [shape = 'u8[16384]{0}', space=vmem, size = 0x4000, scoped, tag = 'output window, operand 0']
    %8 = vsyncpa [#allocation3], 0
    %s9 = scalar_lea.sflag [#allocation3], 1
    %10 = vsyncpa %s9, 0
    %11 = vsyncpa [#allocation6], 0
    %s12 = scalar_lea.sflag [#allocation6], 1
    %13 = vsyncpa %s12, 0
    %14 = vsyncpa [#allocation4], 0
    %s15 = scalar_lea.sflag [#allocation4], 1
    %16 = vsyncpa %s15, 0
    loop: start=0, step=1, limit=6
    $region2: #{tpu_custom_call.1} parent=1 // loop_pre_header
      _
    $region3: #{tpu_custom_call.1} parent=1 // loop_header
      %s18 = sphi 0, %s22
      %p19 = scmp.ge.s32.totalorder %s18, 6
      %s25 = sphi 0, %s37
      %s26 = sphi 0, %s33
      %s27 = sphi 0, %s25
      %s28 = sphi 0, %s26
      %s29 = sphi 0, %s27
      %s30 = sphi 0, %s28
      %s42 = sphi 0, %s44
      %s45 = sphi 0, %s42
      %s46 = sphi 0, %s45
      %s62 = sphi 0, %s46
      %s68 = sphi 0, %s70
      %s71 = sphi 0, %s68
      %s72 = sphi 0, %s71
      %s88 = sphi 0, %s72
      %s94 = sphi 0, %s96
      %s97 = sphi 0, %s94
      %s98 = sphi 0, %s97
      %s114 = sphi 0, %s98
      %s122 = sphi 0, %s124
      %s125 = sphi 0, %s122
      %s126 = sphi 0, %s125
      %s142 = sphi 0, %s126
    $region4: #{tpu_custom_call.1} parent=1 // loop_header_branch
      %21 = sbr.rel (%p19) target = $region8
    $region5: #{tpu_custom_call.1} parent=1 // loop_body
      %s23 = ssub.s32 %s18, 1
      %s24 = ssub.s32 %s18, 2
      %s31 = sadd.s32 1, %s26
      %p32 = scmp.ge.s32.totalorder %s31, 1
      %s33 = scalar_select %p32, 0, %s31
      %s34 = sadd.s32 1, %s25
      %s35 = scalar_select %p32, %s34, %s25
      %p36 = scmp.ge.s32.totalorder %s35, 4
      %s37 = scalar_select %p36, 0, %s35
      %s38 = ssub.s32 %s25, %s37
      %s39 = ssub.s32 %s26, %s33
      %s40 = sor.u32 %s38, %s39
      %p41 = scmp.eq.s32.totalorder %s40, 0
      %s43 = sadd.s32 %s42, 1
      %s44 = scalar_select %p41, %s42, %s43
      %p47 = pneg %p41
      %p48 = scmp.eq.s32.totalorder %s18, 3
      %p49 = por %p47, %p48
      %p50 = scmp.ne.s32.totalorder %s42, %s45
      %p51 = scmp.eq.s32.totalorder %s18, 0
      %p52 = por %p50, %p51
      %p53 = scmp.ne.s32.totalorder %s42, %s45
      %p54 = scmp.eq.s32.totalorder %s23, 3
      %p55 = por %p53, %p54
      %p56 = scmp.ne.s32.totalorder %s45, %s46
      %p57 = scmp.eq.s32.totalorder %s23, 0
      %p58 = por %p56, %p57
      %p59 = scmp.ne.s32.totalorder %s45, %s46
      %p60 = scmp.eq.s32.totalorder %s24, 3
      %p61 = por %p59, %p60
      %p63 = scmp.ne.s32.totalorder %s46, %s62
      %p64 = scmp.eq.s32.totalorder %s24, 0
      %p65 = por %p63, %p64
      %s66 = ssub.s32 %s25, %s37
      %p67 = scmp.eq.s32.totalorder %s66, 0
      %s69 = sadd.s32 %s68, 1
      %s70 = scalar_select %p67, %s68, %s69
      %p73 = pneg %p67
      %p74 = scmp.eq.s32.totalorder %s18, 3
      %p75 = por %p73, %p74
      %p76 = scmp.ne.s32.totalorder %s68, %s71
      %p77 = scmp.eq.s32.totalorder %s18, 0
      %p78 = por %p76, %p77
      %p79 = scmp.ne.s32.totalorder %s68, %s71
      %p80 = scmp.eq.s32.totalorder %s23, 3
      %p81 = por %p79, %p80
      %p82 = scmp.ne.s32.totalorder %s71, %s72
      %p83 = scmp.eq.s32.totalorder %s23, 0
      %p84 = por %p82, %p83
      %p85 = scmp.ne.s32.totalorder %s71, %s72
      %p86 = scmp.eq.s32.totalorder %s24, 3
      %p87 = por %p85, %p86
      %p89 = scmp.ne.s32.totalorder %s72, %s88
      %p90 = scmp.eq.s32.totalorder %s24, 0
      %p91 = por %p89, %p90
      %s92 = ssub.s32 %s25, %s37
      %p93 = scmp.eq.s32.totalorder %s92, 0
      %s95 = sadd.s32 %s94, 1
      %s96 = scalar_select %p93, %s94, %s95
      %p99 = pneg %p93
      %p100 = scmp.eq.s32.totalorder %s18, 3
      %p101 = por %p99, %p100
      %p102 = scmp.ne.s32.totalorder %s94, %s97
      %p103 = scmp.eq.s32.totalorder %s18, 0
      %p104 = por %p102, %p103
      %p105 = scmp.ne.s32.totalorder %s94, %s97
      %p106 = scmp.eq.s32.totalorder %s23, 3
      %p107 = por %p105, %p106
      %p108 = scmp.ne.s32.totalorder %s97, %s98
      %p109 = scmp.eq.s32.totalorder %s23, 0
      %p110 = por %p108, %p109
      %p111 = scmp.ne.s32.totalorder %s97, %s98
      %p112 = scmp.eq.s32.totalorder %s24, 3
      %p113 = por %p111, %p112
      %p115 = scmp.ne.s32.totalorder %s98, %s114
      %p116 = scmp.eq.s32.totalorder %s24, 0
      %p117 = por %p115, %p116
      %s118 = ssub.s32 %s25, %s37
      %s119 = ssub.s32 %s26, %s33
      %s120 = sor.u32 %s118, %s119
      %p121 = scmp.eq.s32.totalorder %s120, 0
      %s123 = sadd.s32 %s122, 1
      %s124 = scalar_select %p121, %s122, %s123
      %p127 = pneg %p121
      %p128 = scmp.eq.s32.totalorder %s18, 3
      %p129 = por %p127, %p128
      %p130 = scmp.ne.s32.totalorder %s122, %s125
      %p131 = scmp.eq.s32.totalorder %s18, 0
      %p132 = por %p130, %p131
      %p133 = scmp.ne.s32.totalorder %s122, %s125
      %p134 = scmp.eq.s32.totalorder %s23, 3
      %p135 = por %p133, %p134
      %p136 = scmp.ne.s32.totalorder %s125, %s126
      %p137 = scmp.eq.s32.totalorder %s23, 0
      %p138 = por %p136, %p137
      %p139 = scmp.ne.s32.totalorder %s125, %s126
      %p140 = scmp.eq.s32.totalorder %s24, 3
      %p141 = por %p139, %p140
      %p143 = scmp.ne.s32.totalorder %s126, %s142
      %p144 = scmp.eq.s32.totalorder %s24, 0
      %p145 = por %p143, %p144
      %p146 = scmp.le.s32.totalorder 1, %s18
      %p147 = scmp.lt.s32.totalorder %s18, 5
      %p148 = pnand %p146, %p147
      %p149 = pneg %p148
      // Predicated region
      $region9: #{tpu_custom_call.1} parent=5 // pred_check
        _
      $region10: #{tpu_custom_call.1} parent=5 // pred_check_branch
        %151 = sbr.rel (%p148) target = $region12
      $region11: #{tpu_custom_call.1} parent=5 // pred_region
        %s152 = ssub.s32 %s18, 1
      $region12: #{tpu_custom_call.1} parent=5 // pred_fallthru
        _
      %p153 = scmp.lt.s32.totalorder %s18, 4
      // Predicated region
      $region13: #{tpu_custom_call.1} parent=5 // pred_check
        %p154 = pneg %p153
      $region14: #{tpu_custom_call.1} parent=5 // pred_check_branch
        %156 = sbr.rel (%p154) target = $region16
      $region15: #{tpu_custom_call.1} parent=5 // pred_region
        // Predicated region
        $region17: #{tpu_custom_call.1} parent=15 // pred_check
          %p157 = pneg %p52
        $region18: #{tpu_custom_call.1} parent=15 // pred_check_branch
          %159 = sbr.rel (%p157) target = $region20
        $region19: #{tpu_custom_call.1} parent=15 // pred_region
          %s160 = sand.u32 %s42, 1
          %s161 = scalar_lea.sflag [#allocation3], %s160
          %s162 = sand.u32 %s42, 1
          %s163 = smul.addr %s162, 16
          %s164 = scalar_lea.vmem [#allocation2], %s163
          %s165 = smul.u32 2, %s26
          %s167 = ssub.s32 256, 256
          %168 = vsyncadd %s161, %s167
          %s169 = smul.addr %s25, 2
          %s170 = sadd.s32 %s165, %s169
          %s171 = smul.addr %s170, 128
          %s172 = scalar_lea.hbm %s0, %s171
          %s173 = sshll.u32 %s164, 4
          %s174 = int_to_ptr.vmem [resolvable:$true] %s173
          %179 = dma.hbm_to_vmem [thread:$0]  %s172, 256, %s174, %s161, 128, 128, 8
        $region20: #{tpu_custom_call.1} parent=15 // pred_fallthru
          _
        // Predicated region
        $region21: #{tpu_custom_call.1} parent=15 // pred_check
          %p180 = pneg %p78
        $region22: #{tpu_custom_call.1} parent=15 // pred_check_branch
          %182 = sbr.rel (%p180) target = $region24
        $region23: #{tpu_custom_call.1} parent=15 // pred_region
          %s183 = sand.u32 %s18, 1
          %s184 = scalar_lea.sflag [#allocation6], %s183
          %s185 = sand.u32 %s68, 1
          %s186 = smul.addr %s185, 128
          %s187 = scalar_lea.vmem [#allocation5], %s186
          %s189 = ssub.s32 2048, 2048
          %190 = vsyncadd %s184, %s189
          %s191 = smul.addr %s25, 16
          %s192 = smul.addr %s191, 128
          %s193 = scalar_lea.hbm %s1, %s192
          %s194 = sshll.u32 %s187, 4
          %s195 = int_to_ptr.vmem [resolvable:$true] %s194
          %200 = dma.hbm_to_vmem [thread:$0]  %s193, 2048, %s195, %s184, 128, 128, 8
        $region24: #{tpu_custom_call.1} parent=15 // pred_fallthru
          _
        // Predicated region
        $region25: #{tpu_custom_call.1} parent=15 // pred_check
          %p201 = pneg %p104
        $region26: #{tpu_custom_call.1} parent=15 // pred_check_branch
          %203 = sbr.rel (%p201) target = $region28
        $region27: #{tpu_custom_call.1} parent=15 // pred_region
          %s204 = sand.u32 %s18, 1
          %s205 = scalar_lea.sflag [#allocation6], %s204
          %s206 = sand.u32 %s94, 1
          %s207 = scalar_lea.vmem [#allocation7], %s206
          %s209 = ssub.s32 16, 16
          %210 = vsyncadd %s205, %s209
          %s211 = smul.addr %s25, 16
          %s212 = scalar_lea.hbm %s2, %s211
          %s214 = sshll.u32 %s207, 4
          %s215 = int_to_ptr.vmem [resolvable:$true] %s214
          %217 = dma.hbm_to_vmem [thread:$0]  %s212, 16, %s215, %s205
        $region28: #{tpu_custom_call.1} parent=15 // pred_fallthru
          _
      $region16: #{tpu_custom_call.1} parent=5 // pred_fallthru
        _
      %p218 = scmp.le.s32.totalorder 1, %s18
      %p219 = scmp.lt.s32.totalorder %s18, 5
      %p220 = pnand %p218, %p219
      %p221 = pneg %p220
      // Predicated region
      $region29: #{tpu_custom_call.1} parent=5 // pred_check
        _
      $region30: #{tpu_custom_call.1} parent=5 // pred_check_branch
        %223 = sbr.rel (%p220) target = $region32
      $region31: #{tpu_custom_call.1} parent=5 // pred_region
        %s224 = ssub.s32 %s18, 1
        %s225 = sand.u32 %s45, 1
        %s226 = scalar_lea.sflag [#allocation3], %s225
        %s227 = sand.u32 %s45, 1
        %s228 = smul.addr %s227, 16
        %s229 = scalar_lea.vmem [#allocation2], %s228
        // Predicated region
        $region33: #{tpu_custom_call.1} parent=31 // pred_check
          %p230 = pneg %p58
        $region34: #{tpu_custom_call.1} parent=31 // pred_check_branch
          %232 = sbr.rel (%p230) target = $region36
        $region35: #{tpu_custom_call.1} parent=31 // pred_region
          %233 = dma.done %s226, 256
        $region36: #{tpu_custom_call.1} parent=31 // pred_fallthru
          _
        %s234 = sand.u32 %s23, 1
        %s235 = scalar_lea.sflag [#allocation6], %s234
        %s236 = sand.u32 %s71, 1
        %s237 = smul.addr %s236, 128
        %s238 = scalar_lea.vmem [#allocation5], %s237
        // Predicated region
        $region37: #{tpu_custom_call.1} parent=31 // pred_check
          %p239 = pneg %p84
        $region38: #{tpu_custom_call.1} parent=31 // pred_check_branch
          %241 = sbr.rel (%p239) target = $region40
        $region39: #{tpu_custom_call.1} parent=31 // pred_region
          %242 = dma.done %s235, 2048
        $region40: #{tpu_custom_call.1} parent=31 // pred_fallthru
          _
        %s243 = sand.u32 %s23, 1
        %s244 = scalar_lea.sflag [#allocation6], %s243
        %s245 = sand.u32 %s97, 1
        %s246 = scalar_lea.vmem [#allocation7], %s245
        // Predicated region
        $region41: #{tpu_custom_call.1} parent=31 // pred_check
          %p247 = pneg %p110
        $region42: #{tpu_custom_call.1} parent=31 // pred_check_branch
          %249 = sbr.rel (%p247) target = $region44
        $region43: #{tpu_custom_call.1} parent=31 // pred_region
          %250 = dma.done %s244, 16
        $region44: #{tpu_custom_call.1} parent=31 // pred_fallthru
          _
        %s251 = sand.u32 %s45, 1
        %s252 = scalar_lea.sflag [#allocation3], %s251
        %s253 = sand.u32 %s45, 1
        %s254 = smul.addr %s253, 16
        %s255 = scalar_lea.vmem [#allocation2], %s254
        %p256 = pneg %p58
        %p257 = pneg %p55
        %s258 = sand.u32 %s23, 1
        %s259 = scalar_lea.sflag [#allocation6], %s258
        %s260 = sand.u32 %s71, 1
        %s261 = smul.addr %s260, 128
        %s262 = scalar_lea.vmem [#allocation5], %s261
        %p263 = pneg %p84
        %p264 = pneg %p81
        %s265 = sand.u32 %s23, 1
        %s266 = scalar_lea.sflag [#allocation6], %s265
        %s267 = sand.u32 %s97, 1
        %s268 = scalar_lea.vmem [#allocation7], %s267
        %p269 = pneg %p110
        %p270 = pneg %p107
        %p271 = pneg %p138
        %p272 = pneg %p135
        %s273 = sand.u32 %s125, 1
        %s274 = scalar_lea.sflag [#allocation4], %s273
        %s275 = sand.u32 %s125, 1
        %s276 = smul.addr %s275, 16
        %s277 = scalar_lea.vmem [#allocation8], %s276
        %s278 = smul.u32 2, %s28
        %s279 = smul.u32 2, %s28
        %v280 = vld [vmem:[%s229] sm:$0xff]
        %v281 = vld [vmem:[%s229 + $0x8] sm:$0xff]
        %v282 = vld [vmem:[%s238] sm:$0xff]
        %v283 = vld [vmem:[%s238 + $0x8] sm:$0xff]
        %v284 = vld [vmem:[%s238 + $0x10] sm:$0xff]
        %v285 = vld [vmem:[%s238 + $0x18] sm:$0xff]
        %v286 = vld [vmem:[%s238 + $0x20] sm:$0xff]
        %v287 = vld [vmem:[%s238 + $0x28] sm:$0xff]
        %v288 = vld [vmem:[%s238 + $0x30] sm:$0xff]
        %v289 = vld [vmem:[%s238 + $0x38] sm:$0xff]
        %v290 = vld [vmem:[%s238 + $0x40] sm:$0xff]
        %v291 = vld [vmem:[%s238 + $0x48] sm:$0xff]
        %v292 = vld [vmem:[%s238 + $0x50] sm:$0xff]
        %v293 = vld [vmem:[%s238 + $0x58] sm:$0xff]
        %v294 = vld [vmem:[%s238 + $0x60] sm:$0xff]
        %v295 = vld [vmem:[%s238 + $0x68] sm:$0xff]
        %v296 = vld [vmem:[%s238 + $0x70] sm:$0xff]
        %v297 = vld [vmem:[%s238 + $0x78] sm:$0xff]
        %v298 = vld [vmem:[%s246] sm:$0x1]
        %v300 = vlaneseq
        %v301 = vshrl.u32 %v300, 7
        %v302 = vsub.s32 0, %v301
        %v303 = vrot.slane %v298, %v302
        %305 = vmatprep.subr.mxu0 0.0
        %306 = vmatpush1.msra.mxu0 %v297
        %307 = vmatprep.subr.mxu0 0.0
        %308 = vmatpush1.msra.mxu0 %v296
        %309 = vmatprep.subr.mxu0 0.0
        %310 = vmatpush1.msra.mxu0 %v295
        %311 = vmatprep.subr.mxu0 0.0
        %312 = vmatpush1.msra.mxu0 %v294
        %313 = vmatprep.subr.mxu0 0.0
        %314 = vmatpush1.msra.mxu0 %v293
        %315 = vmatprep.subr.mxu0 0.0
        %316 = vmatpush1.msra.mxu0 %v292
        %317 = vmatprep.subr.mxu0 0.0
        %318 = vmatpush1.msra.mxu0 %v291
        %319 = vmatprep.subr.mxu0 0.0
        %320 = vmatpush1.msra.mxu0 %v290
        %321 = vmatprep.subr.mxu0 0.0
        %322 = vmatpush1.msra.mxu0 %v289
        %323 = vmatprep.subr.mxu0 0.0
        %324 = vmatpush1.msra.mxu0 %v288
        %325 = vmatprep.subr.mxu0 0.0
        %326 = vmatpush1.msra.mxu0 %v287
        %327 = vmatprep.subr.mxu0 0.0
        %328 = vmatpush1.msra.mxu0 %v286
        %329 = vmatprep.subr.mxu0 0.0
        %330 = vmatpush1.msra.mxu0 %v285
        %331 = vmatprep.subr.mxu0 0.0
        %332 = vmatpush1.msra.mxu0 %v284
        %333 = vmatprep.subr.mxu0 0.0
        %334 = vmatpush1.msra.mxu0 %v283
        %335 = vmatprep.subr.mxu0 0.0
        %336 = vmatpush1.msra.mxu0 %v282
        %337 = vmatprep.subr.mxu0 0.0
        %338 = vmatpush2.msra.mxu0 0.0
        %339 = vmatprep.subr.mxu0 0.0
        %340 = vmatpush2.msra.mxu0 0.0
        %341 = vmatprep.subr.mxu0 0.0
        %342 = vmatpush2.msra.mxu0 0.0
        %343 = vmatprep.subr.mxu0 0.0
        %344 = vmatpush2.msra.mxu0 0.0
        %345 = vmatprep.subr.mxu0 0.0
        %346 = vmatpush2.msra.mxu0 0.0
        %347 = vmatprep.subr.mxu0 0.0
        %348 = vmatpush2.msra.mxu0 0.0
        %349 = vmatprep.subr.mxu0 0.0
        %350 = vmatpush2.msra.mxu0 0.0
        %351 = vmatprep.subr.mxu0 0.0
        %352 = vmatpush2.msra.mxu0 0.0
        %353 = vmatprep.subr.mxu0 0.0
        %354 = vmatpush2.msra.mxu0 0.0
        %355 = vmatprep.subr.mxu0 0.0
        %356 = vmatpush2.msra.mxu0 0.0
        %357 = vmatprep.subr.mxu0 0.0
        %358 = vmatpush2.msra.mxu0 0.0
        %359 = vmatprep.subr.mxu0 0.0
        %360 = vmatpush2.msra.mxu0 0.0
        %361 = vmatprep.subr.mxu0 0.0
        %362 = vmatpush2.msra.mxu0 0.0
        %363 = vmatprep.subr.mxu0 0.0
        %364 = vmatpush2.msra.mxu0 0.0
        %365 = vmatprep.subr.mxu0 0.0
        %366 = vmatpush2.msra.mxu0 0.0
        %367 = vmatprep.subr.mxu0 0.0
        %368 = vmatpush2.msra.mxu0 0.0
        %369 = vmatprep.mubr.f32.mxu0 0.0
        %370 = vmatmul.mubr.f32.gmra.mxu0 %v280
        %v371 = vpop.f32.mrf.mxu0
        %v372 = vadd.f32 %v303, %v371
        %v373 = vpop.f32.mrf.mxu0
        %374 = vmatprep.mubr.f32.mxu0 0.0
        %375 = vmatmul.mubr.f32.gmra.mxu0 %v281
        %v376 = vpop.f32.mrf.mxu0
        %v377 = vadd.f32 %v303, %v376
        %v378 = vpop.f32.mrf.mxu0
        %379 = vdwg.mxu0
        %380 = vst [vmem:[%s277] sm:$0xff] %v372
        %381 = vst [vmem:[%s277 + $0x8] sm:$0xff] %v377
        %s382 = sand.u32 %s125, 1
        %s383 = scalar_lea.sflag [#allocation4], %s382
        %s384 = sand.u32 %s125, 1
        %s385 = smul.addr %s384, 16
        %s386 = scalar_lea.vmem [#allocation8], %s385
        // Predicated region
        $region45: #{tpu_custom_call.1} parent=31 // pred_check
          %p387 = pneg %p135
        $region46: #{tpu_custom_call.1} parent=31 // pred_check_branch
          %389 = sbr.rel (%p387) target = $region48
        $region47: #{tpu_custom_call.1} parent=31 // pred_region
          %s390 = smul.u32 2, %s28
          %s392 = ssub.s32 256, 256
          %393 = vsyncadd %s383, %s392
          %s394 = smul.addr %s27, 2
          %s395 = sadd.s32 %s390, %s394
          %s396 = smul.addr %s395, 128
          %s397 = scalar_lea.hbm %s3, %s396
          %s398 = sshll.u32 %s386, 4
          %s399 = int_to_ptr.vmem [resolvable:$true] %s398
          %404 = dma.vmem_to_hbm [thread:$0]  %s399, 256, %s397, %s383, 128, 128, 8
        $region48: #{tpu_custom_call.1} parent=31 // pred_fallthru
          _
      $region32: #{tpu_custom_call.1} parent=5 // pred_fallthru
        _
      %p405 = scmp.le.s32.totalorder 2, %s18
      // Predicated region
      $region49: #{tpu_custom_call.1} parent=5 // pred_check
        %p406 = pneg %p405
      $region50: #{tpu_custom_call.1} parent=5 // pred_check_branch
        %408 = sbr.rel (%p406) target = $region52
      $region51: #{tpu_custom_call.1} parent=5 // pred_region
        %s409 = ssub.s32 %s18, 2
        // Predicated region
        $region53: #{tpu_custom_call.1} parent=51 // pred_check
          %p410 = pneg %p141
        $region54: #{tpu_custom_call.1} parent=51 // pred_check_branch
          %412 = sbr.rel (%p410) target = $region56
        $region55: #{tpu_custom_call.1} parent=51 // pred_region
          %s413 = sand.u32 %s126, 1
          %s414 = scalar_lea.sflag [#allocation4], %s413
          %s415 = sand.u32 %s126, 1
          %s416 = smul.addr %s415, 16
          %s417 = scalar_lea.vmem [#allocation8], %s416
          %418 = dma.done %s414, 256
        $region56: #{tpu_custom_call.1} parent=51 // pred_fallthru
          _
      $region52: #{tpu_custom_call.1} parent=5 // pred_fallthru
        _
    $region6: #{tpu_custom_call.1} parent=1 // loop_footer
      %s22 = sadd.s32 1, %s18
    $region7: #{tpu_custom_call.1} parent=1 // loop_footer_branch
      %17 = sbr.rel target = $region3
    $region8: #{tpu_custom_call.1} parent=1 // loop_exit
      _
    %419 = vsyncpa [#allocation3], 1
    %s420 = scalar_lea.sflag [#allocation3], 1
    %421 = vsyncpa %s420, 1
    %422 = vsyncpa [#allocation6], 1
    %s423 = scalar_lea.sflag [#allocation6], 1
    %424 = vsyncpa %s423, 1
    %425 = vsyncpa [#allocation4], 1
    %s426 = scalar_lea.sflag [#allocation4], 1
    %427 = vsyncpa %s426, 1

</llo_original>
